<compile_context>
chip_gen: v7x
topology: tpu7x:2x2x1
jax: 0.10.0
libtpu: 0.0.40
codegen_flags: <defaults>
</compile_context>

<pallas_src>
import functools

import numpy as np

import jax
import jax.numpy as jnp
from jax import lax
from jax.experimental import pallas as pl
from jax.experimental.pallas import tpu as pltpu

EPS = 1e-4


def _round_up(x, m):
    return ((x + m - 1) // m) * m


def _mpconv_down_kernel(a_ref, bnd_ref, w1_ref, w2_ref, o_ref, *, precision):
    """One (batch, M-tile) step of the phase-decomposed MPConv1d downsample.

    a_ref:   (tm, CK)  frames [i*tm, i*tm+tm)  (compute dtype)
    bnd_ref: (1,  CK)  first frame of the NEXT tile (the +1 halo frame)
    w1_ref:  (CK, CO)  phase-0 weight, scale folded in, contraction-major
    w2_ref:  (CK, CO)  phase-1 weight, scale folded in, contraction-major
    o_ref:   (tm, CO)  output rows [i*tm, i*tm+tm)
    """
    a = a_ref[...]                                   # frames t      (low phase)
    nxt = bnd_ref[...]                               # frame i*tm+tm
    a_hi = jnp.concatenate([a[1:], nxt], axis=0)     # frames t + 1  (high phase)

    acc = jnp.dot(a, w1_ref[...],
                  preferred_element_type=jnp.float32, precision=precision)
    acc = acc + jnp.dot(a_hi, w2_ref[...],
                        preferred_element_type=jnp.float32, precision=precision)
    o_ref[...] = acc.astype(o_ref.dtype)


def downsample_forward(x, weight, rate, *, tm=1024,
                       compute_dtype=jnp.bfloat16,
                       out_dtype=None,
                       channels_last_output=False,
                       vmem_budget_bytes=24 * 1024 * 1024):
    """x: (B, C, L) NCL.  weight: (C_out, C_in, 2*rate) raw MPConv weight."""
    B, C, L = x.shape
    C_out, C_in, K = weight.shape
    assert C_in == C and K == 2 * rate
    stride, pad = rate, 1
    assert L + 2 * pad >= K, "input too short for this kernel size"
    L_out = (L + 2 * pad - K) // stride + 1
    assert L_out >= 1

    CK = rate * C
    CO = C_out
    cdt = jnp.dtype(compute_dtype)
    odt = jnp.dtype(out_dtype) if out_dtype is not None else x.dtype
    csize, osize = cdt.itemsize, odt.itemsize

    # ---- tile size: multiple of 16 rows, shrunk to fit a conservative VMEM budget ----
    tm = min(tm, _round_up(L_out, 16))
    tm = max(16, _round_up(tm, 16))

    def _footprint(t):
        return (2 * t * CK * csize            # A tile, double-buffered
                + 2 * t * CO * osize          # out tile, double-buffered
                + 2 * 2 * CK * CO * csize     # w1 + w2, resident (2 buffers each)
                + 4 * CK * csize + (1 << 16))

    while tm > 64 and _footprint(tm) > vmem_budget_bytes:
        tm = max(64, _round_up(tm // 2, 16))

    NT = pl.cdiv(L_out, tm)
    M_pad = NT * tm                                   # padded output rows per batch
    frames_padded = max(M_pad, L_out + 1)             # enough frames for every block + halo
    total_len = frames_padded * rate

    # ---- weight preprocessing (tiny; once per call) --------------------------------
    w32 = weight.astype(jnp.float32)
    fan_in = C_in * K
    norm = jnp.sqrt(jnp.sum(w32 * w32, axis=(1, 2)))                 # (C_out,)
    # w_hat/sqrt(fan_in) == w * scale with scale = 1/(EPS*sqrt(fan_in) + ||w_o||)
    scale = 1.0 / (EPS * jnp.sqrt(jnp.float32(fan_in)) + norm)
    wf = w32 * scale[:, None, None]
    # Phase-split, contraction-major: row index = tap*C + channel.
    w1 = wf[:, :, :rate].transpose(2, 1, 0).reshape(CK, CO).astype(cdt)
    w2 = wf[:, :, rate:].transpose(2, 1, 0).reshape(CK, CO).astype(cdt)

    # ---- frame view of the padded, channels-last input (one fused XLA copy) --------
    right = max(0, total_len - (L + pad))
    x_cl = jnp.transpose(x, (0, 2, 1))                                # (B, L, C)
    x_cl = jnp.pad(x_cl, ((0, 0), (pad, right), (0, 0)))[:, :total_len, :]
    A = x_cl.reshape(B, frames_padded, CK).astype(cdt)                # (B, frames, CK)

    # Boundary frame per tile: first frame of the next tile (clamped to frame L_out).
    bidx = np.minimum((np.arange(NT) + 1) * tm, L_out)
    bnd = A[:, bidx, :].reshape(B, NT, 1, CK)                         # tiny: A / tm

    # ---- pallas_call ----------------------------------------------------------------
    fp = _footprint(tm)
    vmem_limit = None
    if fp > (14 << 20):
        vmem_limit = int(min(fp * 3 // 2 + (4 << 20), 100 << 20))

    cost = pl.CostEstimate(
        flops=2 * 2 * B * M_pad * CK * CO,
        transcendentals=0,
        bytes_accessed=int(B * frames_padded * CK * csize
                           + B * NT * CK * csize
                           + 2 * CK * CO * csize
                           + B * M_pad * CO * osize),
    )

    precision = lax.Precision.HIGHEST if cdt == jnp.float32 else None
    kernel = functools.partial(_mpconv_down_kernel, precision=precision)

    out_pad = pl.pallas_call(
        kernel,
        out_shape=jax.ShapeDtypeStruct((B, M_pad, CO), odt),
        grid=(B, NT),
        in_specs=[
            pl.BlockSpec((None, tm, CK), lambda b, i: (b, i, 0)),       # A tile
            pl.BlockSpec((None, None, 1, CK), lambda b, i: (b, i, 0, 0)),  # halo frame
            pl.BlockSpec((CK, CO), lambda b, i: (0, 0)),                # w1: VMEM-resident
            pl.BlockSpec((CK, CO), lambda b, i: (0, 0)),                # w2: VMEM-resident
        ],
        out_specs=pl.BlockSpec((None, tm, CO), lambda b, i: (b, i, 0)),
        compiler_params=pltpu.CompilerParams(
            dimension_semantics=("parallel", "parallel"),
            vmem_limit_bytes=vmem_limit,
        ),
        cost_estimate=cost,
    )(A, bnd, w1, w2)

    out = out_pad[:, :L_out, :]                      # drop padded rows
    if channels_last_output:
        return out                                   # (B, L_out, C_out)
    return jnp.transpose(out, (0, 2, 1))             # (B, C_out, L_out), matches PyTorch


def _reference_forward(x, weight, rate):
    """Pure-JAX reference mirroring the PyTorch MPConv1d eval forward."""
    C_out, C_in, K = weight.shape
    fan_in = C_in * K
    w = weight.astype(jnp.float32)
    norm = jnp.sqrt(jnp.sum(w * w, axis=(1, 2), keepdims=True))
    w_hat = w / (EPS + norm / jnp.sqrt(jnp.float32(fan_in)))
    w_hat = w_hat / jnp.sqrt(jnp.float32(fan_in))
    return lax.conv_general_dilated(
        x, w_hat,
        window_strides=(rate,),
        padding=[(1, 1)],
        dimension_numbers=("NCH", "OIH", "NCH"),
        precision=lax.Precision.HIGHEST,
    )


if __name__ == "__main__":
    root = jax.random.PRNGKey(0)

    def run_case(k, B, C, L, rate, compute_dtype, tol, tm=1024):
        kx, kw = jax.random.split(k)
        x = jax.random.normal(kx, (B, C, L), dtype=jnp.float32)
        w = jax.random.normal(kw, (C, C, 2 * rate), dtype=jnp.float32)
        ref = _reference_forward(x, w, rate)
        fwd = jax.jit(functools.partial(downsample_forward, rate=rate, tm=tm,
                                        compute_dtype=compute_dtype))
        out = jax.block_until_ready(fwd(x, w))
        assert out.shape == ref.shape, (out.shape, ref.shape)
        err = float(jnp.max(jnp.abs(out.astype(jnp.float32) - ref)))
        assert err < tol, (B, C, L, rate, str(compute_dtype), err)

    keys = jax.random.split(root, 5)
    # Module-default small shape: Downsample(dim=4, rate=2) on (B=2, C=4, L=16).
    run_case(keys[0], 2, 4, 16, 2, jnp.float32, 1e-3)
    run_case(keys[1], 2, 4, 16, 2, jnp.bfloat16, 1e-1)
    # Multi-tile path (NT > 1, partial final rows, boundary-frame halo): tm=16.
    run_case(keys[2], 2, 4, 100, 2, jnp.float32, 1e-3, tm=16)
    # L_out an exact multiple of tm (last real row pulls its hi frame from bnd).
    run_case(keys[3], 2, 4, 64, 2, jnp.float32, 1e-3, tm=16)
    # Non-default rate.
    run_case(keys[4], 2, 4, 20, 3, jnp.float32, 1e-3)

    print("KERNEL_OK")
</pallas_src>

<mosaic_0001>
module attributes {stable_mosaic.version = 11 : i64} {
  func.func @_mpconv_down_kernel(%arg0: i32, %arg1: i32, %arg2: memref<1x16x8xf32, #tpu.memory_space<vmem>>, %arg3: memref<1x1x1x8xf32, #tpu.memory_space<vmem>>, %arg4: memref<8x4xf32, #tpu.memory_space<vmem>>, %arg5: memref<8x4xf32, #tpu.memory_space<vmem>>, %arg6: memref<1x16x4xf32, #tpu.memory_space<vmem>>) attributes {dimension_semantics = [#tpu.dimension_semantics<parallel>, #tpu.dimension_semantics<parallel>], iteration_bounds = array<i64: 2, 1>, scalar_prefetch = 0 : i64, scratch_operands = 0 : i64, tpu.core_type = #tpu.core_type<tc>, window_params = [{transform_indices = @transform_0, window_bounds = array<i64: 1, 16, 8>}, {transform_indices = @transform_1, window_bounds = array<i64: 1, 1, 1, 8>}, {pipeline_mode = #tpu.pipeline_mode<synchronous>, transform_indices = @transform_2, window_bounds = array<i64: 8, 4>}, {pipeline_mode = #tpu.pipeline_mode<synchronous>, transform_indices = @transform_3, window_bounds = array<i64: 8, 4>}, {transform_indices = @transform_4, window_bounds = array<i64: 1, 16, 4>}]} {
    %c0 = arith.constant 0 : index
    %c0_0 = arith.constant 0 : index
    %c0_1 = arith.constant 0 : index
    %0 = vector.load %arg2[%c0, %c0_0, %c0_1] : memref<1x16x8xf32, #tpu.memory_space<vmem>>, vector<1x16x8xf32>
    %1 = vector.shape_cast %0 : vector<1x16x8xf32> to vector<16x8xf32>
    %c0_2 = arith.constant 0 : index
    %c0_3 = arith.constant 0 : index
    %c0_4 = arith.constant 0 : index
    %c0_5 = arith.constant 0 : index
    %2 = vector.load %arg3[%c0_2, %c0_3, %c0_4, %c0_5] : memref<1x1x1x8xf32, #tpu.memory_space<vmem>>, vector<1x1x1x8xf32>
    %3 = vector.shape_cast %2 : vector<1x1x1x8xf32> to vector<1x8xf32>
    %4 = vector.extract_strided_slice %1 {offsets = [1, 0], sizes = [15, 8], strides = [1, 1]} : vector<16x8xf32> to vector<15x8xf32>
    %5 = tpu.concatenate %4, %3 in 0 : vector<15x8xf32>, vector<1x8xf32> -> vector<16x8xf32>
    %c0_6 = arith.constant 0 : index
    %c0_7 = arith.constant 0 : index
    %6 = vector.load %arg4[%c0_6, %c0_7] : memref<8x4xf32, #tpu.memory_space<vmem>>, vector<8x4xf32>
    %cst = arith.constant dense<0.000000e+00> : vector<16x4xf32>
    %7 = tpu.matmul %1, %6, %cst {dimension_numbers = #tpu.dot_dimension_numbers<[1], [0], [0], [1], [0, 0, 1, 1], [], []>, precision = #tpu.contract_precision<fp32>} : vector<16x8xf32>, vector<8x4xf32>, vector<16x4xf32> -> vector<16x4xf32>
    %c0_8 = arith.constant 0 : index
    %c0_9 = arith.constant 0 : index
    %8 = vector.load %arg5[%c0_8, %c0_9] : memref<8x4xf32, #tpu.memory_space<vmem>>, vector<8x4xf32>
    %cst_10 = arith.constant dense<0.000000e+00> : vector<16x4xf32>
    %9 = tpu.matmul %5, %8, %cst_10 {dimension_numbers = #tpu.dot_dimension_numbers<[1], [0], [0], [1], [0, 0, 1, 1], [], []>, precision = #tpu.contract_precision<fp32>} : vector<16x8xf32>, vector<8x4xf32>, vector<16x4xf32> -> vector<16x4xf32>
    %10 = arith.addf %7, %9 : vector<16x4xf32>
    %c0_11 = arith.constant 0 : index
    %c0_12 = arith.constant 0 : index
    %c0_13 = arith.constant 0 : index
    %11 = vector.load %arg6[%c0_11, %c0_12, %c0_13] : memref<1x16x4xf32, #tpu.memory_space<vmem>>, vector<1x16x4xf32>
    %12 = vector.shape_cast %11 : vector<1x16x4xf32> to vector<16x4xf32>
    %13 = vector.shape_cast %10 : vector<16x4xf32> to vector<1x16x4xf32>
    tpu.vector_store %arg6[%c0_11, %c0_12, %c0_13], %13 {strides = array<i32>} : memref<1x16x4xf32, #tpu.memory_space<vmem>>, vector<1x16x4xf32>,
    return
  }
  func.func @transform_0(%arg0: i32, %arg1: i32) -> (i32, i32, i32) {
    %c0_i32 = arith.constant 0 : i32
    %c0_i32_0 = arith.constant 0 : i32
    return %arg0, %arg1, %c0_i32 : i32, i32, i32
  }
  func.func @transform_1(%arg0: i32, %arg1: i32) -> (i32, i32, i32, i32) {
    %c0_i32 = arith.constant 0 : i32
    %c0_i32_0 = arith.constant 0 : i32
    %c0_i32_1 = arith.constant 0 : i32
    return %arg0, %arg1, %c0_i32, %c0_i32_0 : i32, i32, i32, i32
  }
  func.func @transform_2(%arg0: i32, %arg1: i32) -> (i32, i32) {
    %c0_i32 = arith.constant 0 : i32
    %c0_i32_0 = arith.constant 0 : i32
    %c0_i32_1 = arith.constant 0 : i32
    return %c0_i32, %c0_i32_0 : i32, i32
  }
  func.func @transform_3(%arg0: i32, %arg1: i32) -> (i32, i32) {
    %c0_i32 = arith.constant 0 : i32
    %c0_i32_0 = arith.constant 0 : i32
    %c0_i32_1 = arith.constant 0 : i32
    return %c0_i32, %c0_i32_0 : i32, i32
  }
  func.func @transform_4(%arg0: i32, %arg1: i32) -> (i32, i32, i32) {
    %c0_i32 = arith.constant 0 : i32
    %c0_i32_0 = arith.constant 0 : i32
    return %arg0, %arg1, %c0_i32 : i32, i32, i32
  }
}

</mosaic_0001>

<llo_original>
// kernel: downsample_forward.1
$region0: #{downsample_forward.1}
  #allocation0 [shape = 'u32[]', space=smem, size = 0x4, offset = 0x4, fixed_abs, tag = 'smem constant byte address 0x4 - core index']
  #allocation1 [shape = 'u32[144,128]{1,0:T(1,128)}', space=vmem, size = 0x12000, scoped, tag = 'internal scratch']
  %s0 = inlined_call_operand.vmem [shape: f32[2,16,8], index: 0, kind: input, shape index: {}]
  %s1 = inlined_call_operand.vmem [shape: f32[2,1,1,8], index: 1, kind: input, shape index: {}]
  %s2 = inlined_call_operand.vmem [shape: f32[8,4], index: 2, kind: input, shape index: {}]
  %s3 = inlined_call_operand.vmem [shape: f32[8,4], index: 3, kind: input, shape index: {}]
  %s4 = inlined_call_operand.vmem [shape: f32[2,16,4], index: 4, kind: output, shape index: {}]
  %s5 = sld [smem:[#allocation0]]
  $region49: #{downsample_forward.1} parent=0
    _
  %s7 = ssub.s32 1, %s5
  %s8 = scalar_select 0, %s7, %s5
  loop: start=0, step=1, limit=4
  $region2: #{downsample_forward.1} parent=0 // loop_pre_header
    _
  $region3: #{downsample_forward.1} parent=0 // loop_header
    %s10 = sphi 0, %s14
    %p11 = scmp.ge.s32.totalorder %s10, 4
    %s17 = sphi 0, %s29
    %s18 = sphi 0, %s25
    %s19 = sphi 0, %s17
    %s20 = sphi 0, %s18
    %s21 = sphi 0, %s19
    %s22 = sphi 0, %s20
    %s34 = sphi 0, %s36
    %s37 = sphi 0, %s34
    %s38 = sphi 0, %s37
    %s54 = sphi 0, %s38
    %s62 = sphi 0, %s64
    %s65 = sphi 0, %s62
    %s66 = sphi 0, %s65
    %s82 = sphi 0, %s66
    %s86 = sphi 0, %s86
    %s88 = sphi 0, %s86
    %s89 = sphi 0, %s88
    %s103 = sphi 0, %s89
    %s107 = sphi 0, %s107
    %s109 = sphi 0, %s107
    %s110 = sphi 0, %s109
    %s124 = sphi 0, %s110
    %s132 = sphi 0, %s134
    %s135 = sphi 0, %s132
    %s136 = sphi 0, %s135
    %s152 = sphi 0, %s136
  $region4: #{downsample_forward.1} parent=0 // loop_header_branch
    %13 = sbr.rel (%p11) target = $region8
  $region5: #{downsample_forward.1} parent=0 // loop_body
    %s15 = ssub.s32 %s10, 1
    %s16 = ssub.s32 %s10, 2
    %s23 = sadd.s32 1, %s18
    %p24 = scmp.ge.s32.totalorder %s23, 1
    %s25 = scalar_select %p24, 0, %s23
    %s26 = sadd.s32 1, %s17
    %s27 = scalar_select %p24, %s26, %s17
    %p28 = scmp.ge.s32.totalorder %s27, 2
    %s29 = scalar_select %p28, 0, %s27
    %s30 = ssub.s32 %s17, %s29
    %s31 = ssub.s32 %s18, %s25
    %s32 = sor.u32 %s30, %s31
    %p33 = scmp.eq.s32.totalorder %s32, 0
    %s35 = sadd.s32 %s34, 1
    %s36 = scalar_select %p33, %s34, %s35
    %p39 = pneg %p33
    %p40 = scmp.eq.s32.totalorder %s10, 1
    %p41 = por %p39, %p40
    %p42 = scmp.ne.s32.totalorder %s34, %s37
    %p43 = scmp.eq.s32.totalorder %s10, 0
    %p44 = por %p42, %p43
    %p45 = scmp.ne.s32.totalorder %s34, %s37
    %p46 = scmp.eq.s32.totalorder %s15, 1
    %p47 = por %p45, %p46
    %p48 = scmp.ne.s32.totalorder %s37, %s38
    %p49 = scmp.eq.s32.totalorder %s15, 0
    %p50 = por %p48, %p49
    %p51 = scmp.ne.s32.totalorder %s37, %s38
    %p52 = scmp.eq.s32.totalorder %s16, 1
    %p53 = por %p51, %p52
    %p55 = scmp.ne.s32.totalorder %s38, %s54
    %p56 = scmp.eq.s32.totalorder %s16, 0
    %p57 = por %p55, %p56
    %s58 = ssub.s32 %s17, %s29
    %s59 = ssub.s32 %s18, %s25
    %s60 = sor.u32 %s58, %s59
    %p61 = scmp.eq.s32.totalorder %s60, 0
    %s63 = sadd.s32 %s62, 1
    %s64 = scalar_select %p61, %s62, %s63
    %p67 = pneg %p61
    %p68 = scmp.eq.s32.totalorder %s10, 1
    %p69 = por %p67, %p68
    %p70 = scmp.ne.s32.totalorder %s62, %s65
    %p71 = scmp.eq.s32.totalorder %s10, 0
    %p72 = por %p70, %p71
    %p73 = scmp.ne.s32.totalorder %s62, %s65
    %p74 = scmp.eq.s32.totalorder %s15, 1
    %p75 = por %p73, %p74
    %p76 = scmp.ne.s32.totalorder %s65, %s66
    %p77 = scmp.eq.s32.totalorder %s15, 0
    %p78 = por %p76, %p77
    %p79 = scmp.ne.s32.totalorder %s65, %s66
    %p80 = scmp.eq.s32.totalorder %s16, 1
    %p81 = por %p79, %p80
    %p83 = scmp.ne.s32.totalorder %s66, %s82
    %p84 = scmp.eq.s32.totalorder %s16, 0
    %p85 = por %p83, %p84
    %s87 = sadd.s32 %s86, 1
    %p90 = scmp.eq.s32.totalorder %s10, 1
    %p91 = scmp.ne.s32.totalorder %s86, %s88
    %p92 = scmp.eq.s32.totalorder %s10, 0
    %p93 = por %p91, %p92
    %p94 = scmp.ne.s32.totalorder %s86, %s88
    %p95 = scmp.eq.s32.totalorder %s15, 1
    %p96 = por %p94, %p95
    %p97 = scmp.ne.s32.totalorder %s88, %s89
    %p98 = scmp.eq.s32.totalorder %s15, 0
    %p99 = por %p97, %p98
    %p100 = scmp.ne.s32.totalorder %s88, %s89
    %p101 = scmp.eq.s32.totalorder %s16, 1
    %p102 = por %p100, %p101
    %p104 = scmp.ne.s32.totalorder %s89, %s103
    %p105 = scmp.eq.s32.totalorder %s16, 0
    %p106 = por %p104, %p105
    %s108 = sadd.s32 %s107, 1
    %p111 = scmp.eq.s32.totalorder %s10, 1
    %p112 = scmp.ne.s32.totalorder %s107, %s109
    %p113 = scmp.eq.s32.totalorder %s10, 0
    %p114 = por %p112, %p113
    %p115 = scmp.ne.s32.totalorder %s107, %s109
    %p116 = scmp.eq.s32.totalorder %s15, 1
    %p117 = por %p115, %p116
    %p118 = scmp.ne.s32.totalorder %s109, %s110
    %p119 = scmp.eq.s32.totalorder %s15, 0
    %p120 = por %p118, %p119
    %p121 = scmp.ne.s32.totalorder %s109, %s110
    %p122 = scmp.eq.s32.totalorder %s16, 1
    %p123 = por %p121, %p122
    %p125 = scmp.ne.s32.totalorder %s110, %s124
    %p126 = scmp.eq.s32.totalorder %s16, 0
    %p127 = por %p125, %p126
    %s128 = ssub.s32 %s17, %s29
    %s129 = ssub.s32 %s18, %s25
    %s130 = sor.u32 %s128, %s129
    %p131 = scmp.eq.s32.totalorder %s130, 0
    %s133 = sadd.s32 %s132, 1
    %s134 = scalar_select %p131, %s132, %s133
    %p137 = pneg %p131
    %p138 = scmp.eq.s32.totalorder %s10, 1
    %p139 = por %p137, %p138
    %p140 = scmp.ne.s32.totalorder %s132, %s135
    %p141 = scmp.eq.s32.totalorder %s10, 0
    %p142 = por %p140, %p141
    %p143 = scmp.ne.s32.totalorder %s132, %s135
    %p144 = scmp.eq.s32.totalorder %s15, 1
    %p145 = por %p143, %p144
    %p146 = scmp.ne.s32.totalorder %s135, %s136
    %p147 = scmp.eq.s32.totalorder %s15, 0
    %p148 = por %p146, %p147
    %p149 = scmp.ne.s32.totalorder %s135, %s136
    %p150 = scmp.eq.s32.totalorder %s16, 1
    %p151 = por %p149, %p150
    %p153 = scmp.ne.s32.totalorder %s136, %s152
    %p154 = scmp.eq.s32.totalorder %s16, 0
    %p155 = por %p153, %p154
    %p156 = scmp.le.s32.totalorder 1, %s10
    %p157 = scmp.lt.s32.totalorder %s10, 3
    %p158 = pnand %p156, %p157
    %p159 = pneg %p158
    // Predicated region
    $region9: #{downsample_forward.1} parent=5 // pred_check
      _
    $region10: #{downsample_forward.1} parent=5 // pred_check_branch
      %161 = sbr.rel (%p158) target = $region12
    $region11: #{downsample_forward.1} parent=5 // pred_region
      %s162 = ssub.s32 %s10, 1
      // Predicated region
      $region13: #{downsample_forward.1} parent=11 // pred_check
        %p163 = pneg %p99
      $region14: #{downsample_forward.1} parent=11 // pred_check_branch
        %165 = sbr.rel (%p163) target = $region16
      $region15: #{downsample_forward.1} parent=11 // pred_region
        _
      $region16: #{downsample_forward.1} parent=11 // pred_fallthru
        _
      // Predicated region
      $region17: #{downsample_forward.1} parent=11 // pred_check
        %p166 = pneg %p120
      $region18: #{downsample_forward.1} parent=11 // pred_check_branch
        %168 = sbr.rel (%p166) target = $region20
      $region19: #{downsample_forward.1} parent=11 // pred_region
        _
      $region20: #{downsample_forward.1} parent=11 // pred_fallthru
        _
    $region12: #{downsample_forward.1} parent=5 // pred_fallthru
      _
    %p169 = scmp.lt.s32.totalorder %s10, 2
    // Predicated region
    $region21: #{downsample_forward.1} parent=5 // pred_check
      %p170 = pneg %p169
    $region22: #{downsample_forward.1} parent=5 // pred_check_branch
      %172 = sbr.rel (%p170) target = $region24
    $region23: #{downsample_forward.1} parent=5 // pred_region
      // Predicated region
      $region25: #{downsample_forward.1} parent=23 // pred_check
        %p173 = pneg %p44
      $region26: #{downsample_forward.1} parent=23 // pred_check_branch
        %175 = sbr.rel (%p173) target = $region28
      $region27: #{downsample_forward.1} parent=23 // pred_region
        %s176 = smul.u32 2, %s18
        %p177 = scmp.lt.s32.totalorder %s17, 1
        %s178 = scalar_select %p177, %s17, 1
        %p179 = scmp.lt.s32.totalorder %s176, 1
        %s180 = scalar_select %p179, %s176, 1
        %s181 = smul.addr %s178, 2
        %s182 = sadd.s32 %s180, %s181
        %s183 = smul.addr %s182, 8
        %s184 = scalar_lea.vmem %s0, %s183
        %s185 = smul.u32 2, %s18
      $region28: #{downsample_forward.1} parent=23 // pred_fallthru
        _
      // Predicated region
      $region29: #{downsample_forward.1} parent=23 // pred_check
        %p186 = pneg %p72
      $region30: #{downsample_forward.1} parent=23 // pred_check_branch
        %188 = sbr.rel (%p186) target = $region32
      $region31: #{downsample_forward.1} parent=23 // pred_region
        %p189 = scmp.lt.s32.totalorder %s17, 1
        %s190 = scalar_select %p189, %s17, 1
        %p191 = scmp.lt.s32.totalorder %s18, 0
        %s192 = scalar_select %p191, %s18, 0
        %s193 = sadd.s32 %s192, %s190
        %s194 = scalar_lea.vmem %s1, %s193
      $region32: #{downsample_forward.1} parent=23 // pred_fallthru
        _
    $region24: #{downsample_forward.1} parent=5 // pred_fallthru
      _
    %p195 = scmp.le.s32.totalorder 1, %s10
    %p196 = scmp.lt.s32.totalorder %s10, 3
    %p197 = pnand %p195, %p196
    %p198 = pneg %p197
    // Predicated region
    $region33: #{downsample_forward.1} parent=5 // pred_check
      _
    $region34: #{downsample_forward.1} parent=5 // pred_check_branch
      %200 = sbr.rel (%p197) target = $region36
    $region35: #{downsample_forward.1} parent=5 // pred_region
      %s201 = ssub.s32 %s10, 1
      %s202 = smul.u32 2, %s20
      %p203 = scmp.lt.s32.totalorder %s19, 1
      %s204 = scalar_select %p203, %s19, 1
      %p205 = scmp.lt.s32.totalorder %s202, 1
      %s206 = scalar_select %p205, %s202, 1
      %s207 = smul.addr %s204, 2
      %s208 = sadd.s32 %s206, %s207
      %s209 = smul.addr %s208, 8
      %s210 = scalar_lea.vmem %s0, %s209
      %p211 = pneg %p50
      %p212 = pneg %p47
      %p213 = scmp.lt.s32.totalorder %s19, 1
      %s214 = scalar_select %p213, %s19, 1
      %p215 = scmp.lt.s32.totalorder %s20, 0
      %s216 = scalar_select %p215, %s20, 0
      %s217 = sadd.s32 %s216, %s214
      %s218 = scalar_lea.vmem %s1, %s217
      %p219 = pneg %p78
      %p220 = pneg %p75
      %p221 = pneg %p99
      %p222 = pneg %p96
      %p223 = pneg %p120
      %p224 = pneg %p117
      %p225 = pneg %p148
      %p226 = pneg %p145
      %s227 = smul.u32 2, %s20
      %p228 = scmp.lt.s32.totalorder %s19, 1
      %s229 = scalar_select %p228, %s19, 1
      %p230 = scmp.lt.s32.totalorder %s227, 1
      %s231 = scalar_select %p230, %s227, 1
      %s232 = smul.addr %s229, 2
      %s233 = sadd.s32 %s231, %s232
      %s234 = smul.addr %s233, 8
      %s235 = scalar_lea.vmem %s4, %s234
      %s236 = smul.u32 2, %s20
      %p237 = scmp.lt.s32.totalorder %s19, 1
      %s238 = scalar_select %p237, %s19, 1
      %p239 = scmp.lt.s32.totalorder %s236, 1
      %s240 = scalar_select %p239, %s236, 1
      %s241 = smul.addr %s238, 2
      %s242 = sadd.s32 %s240, %s241
      %s243 = smul.addr %s242, 8
      %s244 = scalar_lea.vmem %s0, %s243
      %s245 = smul.u32 2, %s20
      %p246 = scmp.lt.s32.totalorder %s19, 1
      %s247 = scalar_select %p246, %s19, 1
      %p248 = scmp.lt.s32.totalorder %s20, 0
      %s249 = scalar_select %p248, %s20, 0
      %s250 = sadd.s32 %s249, %s247
      %s251 = scalar_lea.vmem %s1, %s250
      %s252 = smul.u32 2, %s20
      %p253 = scmp.lt.s32.totalorder %s19, 1
      %s254 = scalar_select %p253, %s19, 1
      %p255 = scmp.lt.s32.totalorder %s252, 1
      %s256 = scalar_select %p255, %s252, 1
      %s257 = smul.addr %s254, 2
      %s258 = sadd.s32 %s256, %s257
      %s259 = smul.addr %s258, 8
      %s260 = scalar_lea.vmem %s4, %s259
      %s261 = smul.u32 2, %s20
      %v262 = vld [vmem:[%s244] sm:$0xff]
      %v263 = vld [vmem:[%s244 + $0x8] sm:$0xff]
      %v264 = vld [vmem:[%s251] sm:$0x1]
      %vm267 = vcmask 1046528
      %v268 = vrot.slane %v262, 1
      %v269 = vrot.slane %v263, 1
      %v270 = vsel %vm267, %v268, %v269
      %v273 = vlaneseq
      %v274 = vshrl.u32 %v273, 7
      %v275 = vsub.s32 0, %v274
      %v276 = vrot.slane %v264, %v275
      %v278 = vsel %vm267, %v269, %v276
      %v279 = vld [vmem:[%s2] sm:$0xff]
      %v280 = vld [vmem:[%s3] sm:$0xff]
      %vm281 = vcmask 64512
      %v282 = vsel %vm281, %v270, 0
      %v285 = vsel %vm281, %v278, 0
      %287 = vmatprep.subr.mxu0 0.0
      %v288 = vand.u32 %v280, 4294901760
      %289 = vmatpush1.msra.mxu0 %v288
      %290 = vmatprep.subr.mxu0 0.0
      %291 = vmatpush1.msra.mxu0 0.0
      %292 = vmatprep.subr.mxu0 0.0
      %293 = vmatpush1.msra.mxu0 0.0
      %294 = vmatprep.subr.mxu0 0.0
      %295 = vmatpush1.msra.mxu0 0.0
      %296 = vmatprep.subr.mxu0 0.0
      %297 = vmatpush1.msra.mxu0 0.0
      %298 = vmatprep.subr.mxu0 0.0
      %299 = vmatpush1.msra.mxu0 0.0
      %300 = vmatprep.subr.mxu0 0.0
      %301 = vmatpush1.msra.mxu0 0.0
      %302 = vmatprep.subr.mxu0 0.0
      %303 = vmatpush1.msra.mxu0 0.0
      %304 = vmatprep.subr.mxu0 0.0
      %305 = vmatpush1.msra.mxu0 0.0
      %306 = vmatprep.subr.mxu0 0.0
      %307 = vmatpush1.msra.mxu0 0.0
      %308 = vmatprep.subr.mxu0 0.0
      %309 = vmatpush1.msra.mxu0 0.0
      %310 = vmatprep.subr.mxu0 0.0
      %311 = vmatpush1.msra.mxu0 0.0
      %312 = vmatprep.subr.mxu0 0.0
      %313 = vmatpush1.msra.mxu0 0.0
      %314 = vmatprep.subr.mxu0 0.0
      %315 = vmatpush1.msra.mxu0 0.0
      %316 = vmatprep.subr.mxu0 0.0
      %317 = vmatpush1.msra.mxu0 0.0
      %318 = vmatprep.subr.mxu0 0.0
      %319 = vmatpush1.msra.mxu0 0.0
      %320 = vmatprep.subr.mxu0 0.0
      %321 = vmatpush1.msra.mxu0 0.0
      %322 = vmatprep.subr.mxu0 0.0
      %323 = vmatpush1.msra.mxu0 0.0
      %324 = vmatprep.subr.mxu0 0.0
      %325 = vmatpush1.msra.mxu0 0.0
      %326 = vmatprep.subr.mxu0 0.0
      %327 = vmatpush1.msra.mxu0 0.0
      %328 = vmatprep.subr.mxu0 0.0
      %329 = vmatpush1.msra.mxu0 0.0
      %330 = vmatprep.subr.mxu0 0.0
      %331 = vmatpush1.msra.mxu0 0.0
      %332 = vmatprep.subr.mxu0 0.0
      %333 = vmatpush1.msra.mxu0 0.0
      %334 = vmatprep.subr.mxu0 0.0
      %335 = vmatpush1.msra.mxu0 0.0
      %336 = vmatprep.subr.mxu0 0.0
      %337 = vmatpush1.msra.mxu0 0.0
      %338 = vmatprep.subr.mxu0 0.0
      %339 = vmatpush1.msra.mxu0 0.0
      %340 = vmatprep.subr.mxu0 0.0
      %341 = vmatpush1.msra.mxu0 0.0
      %342 = vmatprep.subr.mxu0 0.0
      %343 = vmatpush1.msra.mxu0 0.0
      %344 = vmatprep.subr.mxu0 0.0
      %345 = vmatpush1.msra.mxu0 0.0
      %346 = vmatprep.subr.mxu0 0.0
      %347 = vmatpush1.msra.mxu0 0.0
      %348 = vmatprep.subr.mxu0 0.0
      %349 = vmatpush1.msra.mxu0 0.0
      %350 = vmatprep.subr.mxu0 0.0
      %351 = vmatpush1.msra.mxu0 0.0
      %352 = vmatprep.mubr.f32.mxu0 0.0
      %v353 = vand.u32 %v282, 4294901760
      %v354 = vsub.f32 %v282, %v353
      %v355 = vand.u32 %v354, 4294901760
      %v356 = vsub.f32 %v354, %v355
      %v357 = vand.u32 %v356, 4294901760
      %358 = vmatmul.mubr.f32.gmra.mrb[0].mxu0 %v357
      %v359 = vpop.f32.mrb[0].mxu0
      %v360 = vadd.f32 0.0, %v359
      %v361 = vpop.f32.mrb[0].mxu0
      %362 = vmatprep.mubr.f32.mxu0 0.0
      %v363 = vand.u32 %v285, 4294901760
      %v364 = vsub.f32 %v285, %v363
      %v365 = vand.u32 %v364, 4294901760
      %v366 = vsub.f32 %v364, %v365
      %v367 = vand.u32 %v366, 4294901760
      %368 = vmatmul.mubr.f32.gmra.mrb[0].mxu0 %v367
      %v369 = vpop.f32.mrb[0].mxu0
      %v370 = vadd.f32 0.0, %v369
      %v371 = vpop.f32.mrb[0].mxu0
      %372 = vdwg.mxu0
      %373 = vmatprep.subr.mxu0 0.0
      %v374 = vand.u32 %v280, 4294901760
      %v375 = vsub.f32 %v280, %v374
      %v376 = vand.u32 %v375, 4294901760
      %v377 = vsub.f32 %v375, %v376
      %v378 = vand.u32 %v377, 4294901760
      %379 = vmatpush1.msra.mxu0 %v378
      %380 = vmatprep.subr.mxu0 0.0
      %381 = vmatpush1.msra.mxu0 0.0
      %382 = vmatprep.subr.mxu0 0.0
      %383 = vmatpush1.msra.mxu0 0.0
      %384 = vmatprep.subr.mxu0 0.0
      %385 = vmatpush1.msra.mxu0 0.0
      %386 = vmatprep.subr.mxu0 0.0
      %387 = vmatpush1.msra.mxu0 0.0
      %388 = vmatprep.subr.mxu0 0.0
      %389 = vmatpush1.msra.mxu0 0.0
      %390 = vmatprep.subr.mxu0 0.0
      %391 = vmatpush1.msra.mxu0 0.0
      %392 = vmatprep.subr.mxu0 0.0
      %393 = vmatpush1.msra.mxu0 0.0
      %394 = vmatprep.subr.mxu0 0.0
      %395 = vmatpush1.msra.mxu0 0.0
      %396 = vmatprep.subr.mxu0 0.0
      %397 = vmatpush1.msra.mxu0 0.0
      %398 = vmatprep.subr.mxu0 0.0
      %399 = vmatpush1.msra.mxu0 0.0
      %400 = vmatprep.subr.mxu0 0.0
      %401 = vmatpush1.msra.mxu0 0.0
      %402 = vmatprep.subr.mxu0 0.0
      %403 = vmatpush1.msra.mxu0 0.0
      %404 = vmatprep.subr.mxu0 0.0
      %405 = vmatpush1.msra.mxu0 0.0
      %406 = vmatprep.subr.mxu0 0.0
      %407 = vmatpush1.msra.mxu0 0.0
      %408 = vmatprep.subr.mxu0 0.0
      %409 = vmatpush1.msra.mxu0 0.0
      %410 = vmatprep.subr.mxu0 0.0
      %411 = vmatpush1.msra.mxu0 0.0
      %412 = vmatprep.subr.mxu0 0.0
      %413 = vmatpush1.msra.mxu0 0.0
      %414 = vmatprep.subr.mxu0 0.0
      %415 = vmatpush1.msra.mxu0 0.0
      %416 = vmatprep.subr.mxu0 0.0
      %417 = vmatpush1.msra.mxu0 0.0
      %418 = vmatprep.subr.mxu0 0.0
      %419 = vmatpush1.msra.mxu0 0.0
      %420 = vmatprep.subr.mxu0 0.0
      %421 = vmatpush1.msra.mxu0 0.0
      %422 = vmatprep.subr.mxu0 0.0
      %423 = vmatpush1.msra.mxu0 0.0
      %424 = vmatprep.subr.mxu0 0.0
      %425 = vmatpush1.msra.mxu0 0.0
      %426 = vmatprep.subr.mxu0 0.0
      %427 = vmatpush1.msra.mxu0 0.0
      %428 = vmatprep.subr.mxu0 0.0
      %429 = vmatpush1.msra.mxu0 0.0
      %430 = vmatprep.subr.mxu0 0.0
      %431 = vmatpush1.msra.mxu0 0.0
      %432 = vmatprep.subr.mxu0 0.0
      %433 = vmatpush1.msra.mxu0 0.0
      %434 = vmatprep.subr.mxu0 0.0
      %435 = vmatpush1.msra.mxu0 0.0
      %436 = vmatprep.subr.mxu0 0.0
      %437 = vmatpush1.msra.mxu0 0.0
      %438 = vmatprep.subr.mxu0 0.0
      %439 = vmatpush1.msra.mxu0 0.0
      %440 = vmatprep.subr.mxu0 0.0
      %441 = vmatpush1.msra.mxu0 0.0
      %442 = vmatprep.mubr.f32.mxu0 0.0
      %v443 = vand.u32 %v282, 4294901760
      %444 = vmatmul.mubr.f32.gmra.mrb[0].mxu0 %v443
      %v445 = vpop.f32.mrb[0].mxu0
      %v446 = vadd.f32 %v360, %v445
      %v447 = vpop.f32.mrb[0].mxu0
      %448 = vmatprep.mubr.f32.mxu0 0.0
      %v449 = vand.u32 %v285, 4294901760
      %450 = vmatmul.mubr.f32.gmra.mrb[0].mxu0 %v449
      %v451 = vpop.f32.mrb[0].mxu0
      %v452 = vadd.f32 %v370, %v451
      %v453 = vpop.f32.mrb[0].mxu0
      %454 = vdwg.mxu0
      %455 = vmatprep.subr.mxu0 0.0
      %v456 = vand.u32 %v280, 4294901760
      %v457 = vsub.f32 %v280, %v456
      %458 = vmatpush1.msra.mxu0 %v457
      %459 = vmatprep.subr.mxu0 0.0
      %460 = vmatpush1.msra.mxu0 0.0
      %461 = vmatprep.subr.mxu0 0.0
      %462 = vmatpush1.msra.mxu0 0.0
      %463 = vmatprep.subr.mxu0 0.0
      %464 = vmatpush1.msra.mxu0 0.0
      %465 = vmatprep.subr.mxu0 0.0
      %466 = vmatpush1.msra.mxu0 0.0
      %467 = vmatprep.subr.mxu0 0.0
      %468 = vmatpush1.msra.mxu0 0.0
      %469 = vmatprep.subr.mxu0 0.0
      %470 = vmatpush1.msra.mxu0 0.0
      %471 = vmatprep.subr.mxu0 0.0
      %472 = vmatpush1.msra.mxu0 0.0
      %473 = vmatprep.subr.mxu0 0.0
      %474 = vmatpush1.msra.mxu0 0.0
      %475 = vmatprep.subr.mxu0 0.0
      %476 = vmatpush1.msra.mxu0 0.0
      %477 = vmatprep.subr.mxu0 0.0
      %478 = vmatpush1.msra.mxu0 0.0
      %479 = vmatprep.subr.mxu0 0.0
      %480 = vmatpush1.msra.mxu0 0.0
      %481 = vmatprep.subr.mxu0 0.0
      %482 = vmatpush1.msra.mxu0 0.0
      %483 = vmatprep.subr.mxu0 0.0
      %484 = vmatpush1.msra.mxu0 0.0
      %485 = vmatprep.subr.mxu0 0.0
      %486 = vmatpush1.msra.mxu0 0.0
      %487 = vmatprep.subr.mxu0 0.0
      %488 = vmatpush1.msra.mxu0 0.0
      %489 = vmatprep.subr.mxu0 0.0
      %490 = vmatpush1.msra.mxu0 0.0
      %491 = vmatprep.subr.mxu0 0.0
      %492 = vmatpush1.msra.mxu0 0.0
      %493 = vmatprep.subr.mxu0 0.0
      %494 = vmatpush1.msra.mxu0 0.0
      %495 = vmatprep.subr.mxu0 0.0
      %496 = vmatpush1.msra.mxu0 0.0
      %497 = vmatprep.subr.mxu0 0.0
      %498 = vmatpush1.msra.mxu0 0.0
      %499 = vmatprep.subr.mxu0 0.0
      %500 = vmatpush1.msra.mxu0 0.0
      %501 = vmatprep.subr.mxu0 0.0
      %502 = vmatpush1.msra.mxu0 0.0
      %503 = vmatprep.subr.mxu0 0.0
      %504 = vmatpush1.msra.mxu0 0.0
      %505 = vmatprep.subr.mxu0 0.0
      %506 = vmatpush1.msra.mxu0 0.0
      %507 = vmatprep.subr.mxu0 0.0
      %508 = vmatpush1.msra.mxu0 0.0
      %509 = vmatprep.subr.mxu0 0.0
      %510 = vmatpush1.msra.mxu0 0.0
      %511 = vmatprep.subr.mxu0 0.0
      %512 = vmatpush1.msra.mxu0 0.0
      %513 = vmatprep.subr.mxu0 0.0
      %514 = vmatpush1.msra.mxu0 0.0
      %515 = vmatprep.subr.mxu0 0.0
      %516 = vmatpush1.msra.mxu0 0.0
      %517 = vmatprep.subr.mxu0 0.0
      %518 = vmatpush1.msra.mxu0 0.0
      %519 = vmatprep.subr.mxu0 0.0
      %520 = vmatpush1.msra.mxu0 0.0
      %521 = vmatprep.mubr.f32.mxu0 0.0
      %v522 = vand.u32 %v282, 4294901760
      %v523 = vsub.f32 %v282, %v522
      %524 = vmatmul.mubr.f32.gmra.mrb[0].mxu0 %v523
      %v525 = vpop.f32.mrb[0].mxu0
      %v526 = vadd.f32 %v446, %v525
      %v527 = vpop.f32.mrb[0].mxu0
      %528 = vmatprep.mubr.f32.mxu0 0.0
      %v529 = vand.u32 %v285, 4294901760
      %v530 = vsub.f32 %v285, %v529
      %531 = vmatmul.mubr.f32.gmra.mrb[0].mxu0 %v530
      %v532 = vpop.f32.mrb[0].mxu0
      %v533 = vadd.f32 %v452, %v532
      %v534 = vpop.f32.mrb[0].mxu0
      %535 = vdwg.mxu0
      %536 = vmatprep.subr.mxu0 0.0
      %v537 = vand.u32 %v280, 4294901760
      %538 = vmatpush1.msra.mxu0 %v537
      %539 = vmatprep.subr.mxu0 0.0
      %540 = vmatpush1.msra.mxu0 0.0
      %541 = vmatprep.subr.mxu0 0.0
      %542 = vmatpush1.msra.mxu0 0.0
      %543 = vmatprep.subr.mxu0 0.0
      %544 = vmatpush1.msra.mxu0 0.0
      %545 = vmatprep.subr.mxu0 0.0
      %546 = vmatpush1.msra.mxu0 0.0
      %547 = vmatprep.subr.mxu0 0.0
      %548 = vmatpush1.msra.mxu0 0.0
      %549 = vmatprep.subr.mxu0 0.0
      %550 = vmatpush1.msra.mxu0 0.0
      %551 = vmatprep.subr.mxu0 0.0
      %552 = vmatpush1.msra.mxu0 0.0
      %553 = vmatprep.subr.mxu0 0.0
      %554 = vmatpush1.msra.mxu0 0.0
      %555 = vmatprep.subr.mxu0 0.0
      %556 = vmatpush1.msra.mxu0 0.0
      %557 = vmatprep.subr.mxu0 0.0
      %558 = vmatpush1.msra.mxu0 0.0
      %559 = vmatprep.subr.mxu0 0.0
      %560 = vmatpush1.msra.mxu0 0.0
      %561 = vmatprep.subr.mxu0 0.0
      %562 = vmatpush1.msra.mxu0 0.0
      %563 = vmatprep.subr.mxu0 0.0
      %564 = vmatpush1.msra.mxu0 0.0
      %565 = vmatprep.subr.mxu0 0.0
      %566 = vmatpush1.msra.mxu0 0.0
      %567 = vmatprep.subr.mxu0 0.0
      %568 = vmatpush1.msra.mxu0 0.0
      %569 = vmatprep.subr.mxu0 0.0
      %570 = vmatpush1.msra.mxu0 0.0
      %571 = vmatprep.subr.mxu0 0.0
      %572 = vmatpush1.msra.mxu0 0.0
      %573 = vmatprep.subr.mxu0 0.0
      %574 = vmatpush1.msra.mxu0 0.0
      %575 = vmatprep.subr.mxu0 0.0
      %576 = vmatpush1.msra.mxu0 0.0
      %577 = vmatprep.subr.mxu0 0.0
      %578 = vmatpush1.msra.mxu0 0.0
      %579 = vmatprep.subr.mxu0 0.0
      %580 = vmatpush1.msra.mxu0 0.0
      %581 = vmatprep.subr.mxu0 0.0
      %582 = vmatpush1.msra.mxu0 0.0
      %583 = vmatprep.subr.mxu0 0.0
      %584 = vmatpush1.msra.mxu0 0.0
      %585 = vmatprep.subr.mxu0 0.0
      %586 = vmatpush1.msra.mxu0 0.0
      %587 = vmatprep.subr.mxu0 0.0
      %588 = vmatpush1.msra.mxu0 0.0
      %589 = vmatprep.subr.mxu0 0.0
      %590 = vmatpush1.msra.mxu0 0.0
      %591 = vmatprep.subr.mxu0 0.0
      %592 = vmatpush1.msra.mxu0 0.0
      %593 = vmatprep.subr.mxu0 0.0
      %594 = vmatpush1.msra.mxu0 0.0
      %595 = vmatprep.subr.mxu0 0.0
      %596 = vmatpush1.msra.mxu0 0.0
      %597 = vmatprep.subr.mxu0 0.0
      %598 = vmatpush1.msra.mxu0 0.0
      %599 = vmatprep.subr.mxu0 0.0
      %600 = vmatpush1.msra.mxu0 0.0
      %601 = vmatprep.mubr.f32.mxu0 0.0
      %v602 = vand.u32 %v282, 4294901760
      %v603 = vsub.f32 %v282, %v602
      %v604 = vand.u32 %v603, 4294901760
      %605 = vmatmul.mubr.f32.gmra.mrb[0].mxu0 %v604
      %v606 = vpop.f32.mrb[0].mxu0
      %v607 = vadd.f32 %v526, %v606
      %v608 = vpop.f32.mrb[0].mxu0
      %609 = vmatprep.mubr.f32.mxu0 0.0
      %v610 = vand.u32 %v285, 4294901760
      %v611 = vsub.f32 %v285, %v610
      %v612 = vand.u32 %v611, 4294901760
      %613 = vmatmul.mubr.f32.gmra.mrb[0].mxu0 %v612
      %v614 = vpop.f32.mrb[0].mxu0
      %v615 = vadd.f32 %v533, %v614
      %v616 = vpop.f32.mrb[0].mxu0
      %617 = vdwg.mxu0
      %618 = vmatprep.subr.mxu0 0.0
      %v619 = vand.u32 %v280, 4294901760
      %v620 = vsub.f32 %v280, %v619
      %v621 = vand.u32 %v620, 4294901760
      %622 = vmatpush1.msra.mxu0 %v621
      %623 = vmatprep.subr.mxu0 0.0
      %624 = vmatpush1.msra.mxu0 0.0
      %625 = vmatprep.subr.mxu0 0.0
      %626 = vmatpush1.msra.mxu0 0.0
      %627 = vmatprep.subr.mxu0 0.0
      %628 = vmatpush1.msra.mxu0 0.0
      %629 = vmatprep.subr.mxu0 0.0
      %630 = vmatpush1.msra.mxu0 0.0
      %631 = vmatprep.subr.mxu0 0.0
      %632 = vmatpush1.msra.mxu0 0.0
      %633 = vmatprep.subr.mxu0 0.0
      %634 = vmatpush1.msra.mxu0 0.0
      %635 = vmatprep.subr.mxu0 0.0
      %636 = vmatpush1.msra.mxu0 0.0
      %637 = vmatprep.subr.mxu0 0.0
      %638 = vmatpush1.msra.mxu0 0.0
      %639 = vmatprep.subr.mxu0 0.0
      %640 = vmatpush1.msra.mxu0 0.0
      %641 = vmatprep.subr.mxu0 0.0
      %642 = vmatpush1.msra.mxu0 0.0
      %643 = vmatprep.subr.mxu0 0.0
      %644 = vmatpush1.msra.mxu0 0.0
      %645 = vmatprep.subr.mxu0 0.0
      %646 = vmatpush1.msra.mxu0 0.0
      %647 = vmatprep.subr.mxu0 0.0
      %648 = vmatpush1.msra.mxu0 0.0
      %649 = vmatprep.subr.mxu0 0.0
      %650 = vmatpush1.msra.mxu0 0.0
      %651 = vmatprep.subr.mxu0 0.0
      %652 = vmatpush1.msra.mxu0 0.0
      %653 = vmatprep.subr.mxu0 0.0
      %654 = vmatpush1.msra.mxu0 0.0
      %655 = vmatprep.subr.mxu0 0.0
      %656 = vmatpush1.msra.mxu0 0.0
      %657 = vmatprep.subr.mxu0 0.0
      %658 = vmatpush1.msra.mxu0 0.0
      %659 = vmatprep.subr.mxu0 0.0
      %660 = vmatpush1.msra.mxu0 0.0
      %661 = vmatprep.subr.mxu0 0.0
      %662 = vmatpush1.msra.mxu0 0.0
      %663 = vmatprep.subr.mxu0 0.0
      %664 = vmatpush1.msra.mxu0 0.0
      %665 = vmatprep.subr.mxu0 0.0
      %666 = vmatpush1.msra.mxu0 0.0
      %667 = vmatprep.subr.mxu0 0.0
      %668 = vmatpush1.msra.mxu0 0.0
      %669 = vmatprep.subr.mxu0 0.0
      %670 = vmatpush1.msra.mxu0 0.0
      %671 = vmatprep.subr.mxu0 0.0
      %672 = vmatpush1.msra.mxu0 0.0
      %673 = vmatprep.subr.mxu0 0.0
      %674 = vmatpush1.msra.mxu0 0.0
      %675 = vmatprep.subr.mxu0 0.0
      %676 = vmatpush1.msra.mxu0 0.0
      %677 = vmatprep.subr.mxu0 0.0
      %678 = vmatpush1.msra.mxu0 0.0
      %679 = vmatprep.subr.mxu0 0.0
      %680 = vmatpush1.msra.mxu0 0.0
      %681 = vmatprep.subr.mxu0 0.0
      %682 = vmatpush1.msra.mxu0 0.0
      %683 = vmatprep.subr.mxu0 0.0
      %684 = vmatpush1.msra.mxu0 0.0
      %685 = vmatprep.mubr.f32.mxu0 0.0
      %v686 = vand.u32 %v282, 4294901760
      %687 = vmatmul.mubr.f32.gmra.mrb[0].mxu0 %v686
      %v688 = vpop.f32.mrb[0].mxu0
      %v689 = vadd.f32 %v607, %v688
      %v690 = vpop.f32.mrb[0].mxu0
      %691 = vmatprep.mubr.f32.mxu0 0.0
      %v692 = vand.u32 %v285, 4294901760
      %693 = vmatmul.mubr.f32.gmra.mrb[0].mxu0 %v692
      %v694 = vpop.f32.mrb[0].mxu0
      %v695 = vadd.f32 %v615, %v694
      %v696 = vpop.f32.mrb[0].mxu0
      %697 = vdwg.mxu0
      %698 = vmatprep.subr.mxu0 0.0
      %v699 = vand.u32 %v280, 4294901760
      %700 = vmatpush1.msra.mxu0 %v699
      %701 = vmatprep.subr.mxu0 0.0
      %702 = vmatpush1.msra.mxu0 0.0
      %703 = vmatprep.subr.mxu0 0.0
      %704 = vmatpush1.msra.mxu0 0.0
      %705 = vmatprep.subr.mxu0 0.0
      %706 = vmatpush1.msra.mxu0 0.0
      %707 = vmatprep.subr.mxu0 0.0
      %708 = vmatpush1.msra.mxu0 0.0
      %709 = vmatprep.subr.mxu0 0.0
      %710 = vmatpush1.msra.mxu0 0.0
      %711 = vmatprep.subr.mxu0 0.0
      %712 = vmatpush1.msra.mxu0 0.0
      %713 = vmatprep.subr.mxu0 0.0
      %714 = vmatpush1.msra.mxu0 0.0
      %715 = vmatprep.subr.mxu0 0.0
      %716 = vmatpush1.msra.mxu0 0.0
      %717 = vmatprep.subr.mxu0 0.0
      %718 = vmatpush1.msra.mxu0 0.0
      %719 = vmatprep.subr.mxu0 0.0
      %720 = vmatpush1.msra.mxu0 0.0
      %721 = vmatprep.subr.mxu0 0.0
      %722 = vmatpush1.msra.mxu0 0.0
      %723 = vmatprep.subr.mxu0 0.0
      %724 = vmatpush1.msra.mxu0 0.0
      %725 = vmatprep.subr.mxu0 0.0
      %726 = vmatpush1.msra.mxu0 0.0
      %727 = vmatprep.subr.mxu0 0.0
      %728 = vmatpush1.msra.mxu0 0.0
      %729 = vmatprep.subr.mxu0 0.0
      %730 = vmatpush1.msra.mxu0 0.0
      %731 = vmatprep.subr.mxu0 0.0
      %732 = vmatpush1.msra.mxu0 0.0
      %733 = vmatprep.subr.mxu0 0.0
      %734 = vmatpush1.msra.mxu0 0.0
      %735 = vmatprep.subr.mxu0 0.0
      %736 = vmatpush1.msra.mxu0 0.0
      %737 = vmatprep.subr.mxu0 0.0
      %738 = vmatpush1.msra.mxu0 0.0
      %739 = vmatprep.subr.mxu0 0.0
      %740 = vmatpush1.msra.mxu0 0.0
      %741 = vmatprep.subr.mxu0 0.0
      %742 = vmatpush1.msra.mxu0 0.0
      %743 = vmatprep.subr.mxu0 0.0
      %744 = vmatpush1.msra.mxu0 0.0
      %745 = vmatprep.subr.mxu0 0.0
      %746 = vmatpush1.msra.mxu0 0.0
      %747 = vmatprep.subr.mxu0 0.0
      %748 = vmatpush1.msra.mxu0 0.0
      %749 = vmatprep.subr.mxu0 0.0
      %750 = vmatpush1.msra.mxu0 0.0
      %751 = vmatprep.subr.mxu0 0.0
      %752 = vmatpush1.msra.mxu0 0.0
      %753 = vmatprep.subr.mxu0 0.0
      %754 = vmatpush1.msra.mxu0 0.0
      %755 = vmatprep.subr.mxu0 0.0
      %756 = vmatpush1.msra.mxu0 0.0
      %757 = vmatprep.subr.mxu0 0.0
      %758 = vmatpush1.msra.mxu0 0.0
      %759 = vmatprep.subr.mxu0 0.0
      %760 = vmatpush1.msra.mxu0 0.0
      %761 = vmatprep.subr.mxu0 0.0
      %762 = vmatpush1.msra.mxu0 0.0
      %763 = vmatprep.mubr.f32.mxu0 0.0
      %v764 = vand.u32 %v282, 4294901760
      %765 = vmatmul.mubr.f32.gmra.mrb[0].mxu0 %v764
      %v766 = vpop.f32.mrb[0].mxu0
      %v767 = vadd.f32 %v689, %v766
      %v768 = vpop.f32.mrb[0].mxu0
      %769 = vmatprep.mubr.f32.mxu0 0.0
      %v770 = vand.u32 %v285, 4294901760
      %771 = vmatmul.mubr.f32.gmra.mrb[0].mxu0 %v770
      %v772 = vpop.f32.mrb[0].mxu0
      %v773 = vadd.f32 %v695, %v772
      %v774 = vpop.f32.mrb[0].mxu0
      %775 = vdwg.mxu0
      %v776 = vsel %vm281, %v262, 0
      %v778 = vsel %vm281, %v263, 0
      %780 = vmatprep.subr.mxu0 0.0
      %v781 = vand.u32 %v279, 4294901760
      %782 = vmatpush1.msra.mxu0 %v781
      %783 = vmatprep.subr.mxu0 0.0
      %784 = vmatpush1.msra.mxu0 0.0
      %785 = vmatprep.subr.mxu0 0.0
      %786 = vmatpush1.msra.mxu0 0.0
      %787 = vmatprep.subr.mxu0 0.0
      %788 = vmatpush1.msra.mxu0 0.0
      %789 = vmatprep.subr.mxu0 0.0
      %790 = vmatpush1.msra.mxu0 0.0
      %791 = vmatprep.subr.mxu0 0.0
      %792 = vmatpush1.msra.mxu0 0.0
      %793 = vmatprep.subr.mxu0 0.0
      %794 = vmatpush1.msra.mxu0 0.0
      %795 = vmatprep.subr.mxu0 0.0
      %796 = vmatpush1.msra.mxu0 0.0
      %797 = vmatprep.subr.mxu0 0.0
      %798 = vmatpush1.msra.mxu0 0.0
      %799 = vmatprep.subr.mxu0 0.0
      %800 = vmatpush1.msra.mxu0 0.0
      %801 = vmatprep.subr.mxu0 0.0
      %802 = vmatpush1.msra.mxu0 0.0
      %803 = vmatprep.subr.mxu0 0.0
      %804 = vmatpush1.msra.mxu0 0.0
      %805 = vmatprep.subr.mxu0 0.0
      %806 = vmatpush1.msra.mxu0 0.0
      %807 = vmatprep.subr.mxu0 0.0
      %808 = vmatpush1.msra.mxu0 0.0
      %809 = vmatprep.subr.mxu0 0.0
      %810 = vmatpush1.msra.mxu0 0.0
      %811 = vmatprep.subr.mxu0 0.0
      %812 = vmatpush1.msra.mxu0 0.0
      %813 = vmatprep.subr.mxu0 0.0
      %814 = vmatpush1.msra.mxu0 0.0
      %815 = vmatprep.subr.mxu0 0.0
      %816 = vmatpush1.msra.mxu0 0.0
      %817 = vmatprep.subr.mxu0 0.0
      %818 = vmatpush1.msra.mxu0 0.0
      %819 = vmatprep.subr.mxu0 0.0
      %820 = vmatpush1.msra.mxu0 0.0
      %821 = vmatprep.subr.mxu0 0.0
      %822 = vmatpush1.msra.mxu0 0.0
      %823 = vmatprep.subr.mxu0 0.0
      %824 = vmatpush1.msra.mxu0 0.0
      %825 = vmatprep.subr.mxu0 0.0
      %826 = vmatpush1.msra.mxu0 0.0
      %827 = vmatprep.subr.mxu0 0.0
      %828 = vmatpush1.msra.mxu0 0.0
      %829 = vmatprep.subr.mxu0 0.0
      %830 = vmatpush1.msra.mxu0 0.0
      %831 = vmatprep.subr.mxu0 0.0
      %832 = vmatpush1.msra.mxu0 0.0
      %833 = vmatprep.subr.mxu0 0.0
      %834 = vmatpush1.msra.mxu0 0.0
      %835 = vmatprep.subr.mxu0 0.0
      %836 = vmatpush1.msra.mxu0 0.0
      %837 = vmatprep.subr.mxu0 0.0
      %838 = vmatpush1.msra.mxu0 0.0
      %839 = vmatprep.subr.mxu0 0.0
      %840 = vmatpush1.msra.mxu0 0.0
      %841 = vmatprep.subr.mxu0 0.0
      %842 = vmatpush1.msra.mxu0 0.0
      %843 = vmatprep.subr.mxu0 0.0
      %844 = vmatpush1.msra.mxu0 0.0
      %845 = vmatprep.mubr.f32.mxu0 0.0
      %v846 = vand.u32 %v776, 4294901760
      %v847 = vsub.f32 %v776, %v846
      %v848 = vand.u32 %v847, 4294901760
      %v849 = vsub.f32 %v847, %v848
      %v850 = vand.u32 %v849, 4294901760
      %851 = vmatmul.mubr.f32.gmra.mrb[0].mxu0 %v850
      %v852 = vpop.f32.mrb[0].mxu0
      %v853 = vadd.f32 %v767, %v852
      %v854 = vpop.f32.mrb[0].mxu0
      %855 = vmatprep.mubr.f32.mxu0 0.0
      %v856 = vand.u32 %v778, 4294901760
      %v857 = vsub.f32 %v778, %v856
      %v858 = vand.u32 %v857, 4294901760
      %v859 = vsub.f32 %v857, %v858
      %v860 = vand.u32 %v859, 4294901760
      %861 = vmatmul.mubr.f32.gmra.mrb[0].mxu0 %v860
      %v862 = vpop.f32.mrb[0].mxu0
      %v863 = vadd.f32 %v773, %v862
      %v864 = vpop.f32.mrb[0].mxu0
      %865 = vdwg.mxu0
      %866 = vmatprep.subr.mxu0 0.0
      %v867 = vand.u32 %v279, 4294901760
      %v868 = vsub.f32 %v279, %v867
      %v869 = vand.u32 %v868, 4294901760
      %v870 = vsub.f32 %v868, %v869
      %v871 = vand.u32 %v870, 4294901760
      %872 = vmatpush1.msra.mxu0 %v871
      %873 = vmatprep.subr.mxu0 0.0
      %874 = vmatpush1.msra.mxu0 0.0
      %875 = vmatprep.subr.mxu0 0.0
      %876 = vmatpush1.msra.mxu0 0.0
      %877 = vmatprep.subr.mxu0 0.0
      %878 = vmatpush1.msra.mxu0 0.0
      %879 = vmatprep.subr.mxu0 0.0
      %880 = vmatpush1.msra.mxu0 0.0
      %881 = vmatprep.subr.mxu0 0.0
      %882 = vmatpush1.msra.mxu0 0.0
      %883 = vmatprep.subr.mxu0 0.0
      %884 = vmatpush1.msra.mxu0 0.0
      %885 = vmatprep.subr.mxu0 0.0
      %886 = vmatpush1.msra.mxu0 0.0
      %887 = vmatprep.subr.mxu0 0.0
      %888 = vmatpush1.msra.mxu0 0.0
      %889 = vmatprep.subr.mxu0 0.0
      %890 = vmatpush1.msra.mxu0 0.0
      %891 = vmatprep.subr.mxu0 0.0
      %892 = vmatpush1.msra.mxu0 0.0
      %893 = vmatprep.subr.mxu0 0.0
      %894 = vmatpush1.msra.mxu0 0.0
      %895 = vmatprep.subr.mxu0 0.0
      %896 = vmatpush1.msra.mxu0 0.0
      %897 = vmatprep.subr.mxu0 0.0
      %898 = vmatpush1.msra.mxu0 0.0
      %899 = vmatprep.subr.mxu0 0.0
      %900 = vmatpush1.msra.mxu0 0.0
      %901 = vmatprep.subr.mxu0 0.0
      %902 = vmatpush1.msra.mxu0 0.0
      %903 = vmatprep.subr.mxu0 0.0
      %904 = vmatpush1.msra.mxu0 0.0
      %905 = vmatprep.subr.mxu0 0.0
      %906 = vmatpush1.msra.mxu0 0.0
      %907 = vmatprep.subr.mxu0 0.0
      %908 = vmatpush1.msra.mxu0 0.0
      %909 = vmatprep.subr.mxu0 0.0
      %910 = vmatpush1.msra.mxu0 0.0
      %911 = vmatprep.subr.mxu0 0.0
      %912 = vmatpush1.msra.mxu0 0.0
      %913 = vmatprep.subr.mxu0 0.0
      %914 = vmatpush1.msra.mxu0 0.0
      %915 = vmatprep.subr.mxu0 0.0
      %916 = vmatpush1.msra.mxu0 0.0
      %917 = vmatprep.subr.mxu0 0.0
      %918 = vmatpush1.msra.mxu0 0.0
      %919 = vmatprep.subr.mxu0 0.0
      %920 = vmatpush1.msra.mxu0 0.0
      %921 = vmatprep.subr.mxu0 0.0
      %922 = vmatpush1.msra.mxu0 0.0
      %923 = vmatprep.subr.mxu0 0.0
      %924 = vmatpush1.msra.mxu0 0.0
      %925 = vmatprep.subr.mxu0 0.0
      %926 = vmatpush1.msra.mxu0 0.0
      %927 = vmatprep.subr.mxu0 0.0
      %928 = vmatpush1.msra.mxu0 0.0
      %929 = vmatprep.subr.mxu0 0.0
      %930 = vmatpush1.msra.mxu0 0.0
      %931 = vmatprep.subr.mxu0 0.0
      %932 = vmatpush1.msra.mxu0 0.0
      %933 = vmatprep.subr.mxu0 0.0
      %934 = vmatpush1.msra.mxu0 0.0
      %935 = vmatprep.mubr.f32.mxu0 0.0
      %v936 = vand.u32 %v776, 4294901760
      %937 = vmatmul.mubr.f32.gmra.mrb[0].mxu0 %v936
      %v938 = vpop.f32.mrb[0].mxu0
      %v939 = vadd.f32 %v853, %v938
      %v940 = vpop.f32.mrb[0].mxu0
      %941 = vmatprep.mubr.f32.mxu0 0.0
      %v942 = vand.u32 %v778, 4294901760
      %943 = vmatmul.mubr.f32.gmra.mrb[0].mxu0 %v942
      %v944 = vpop.f32.mrb[0].mxu0
      %v945 = vadd.f32 %v863, %v944
      %v946 = vpop.f32.mrb[0].mxu0
      %947 = vdwg.mxu0
      %948 = vmatprep.subr.mxu0 0.0
      %v949 = vand.u32 %v279, 4294901760
      %v950 = vsub.f32 %v279, %v949
      %951 = vmatpush1.msra.mxu0 %v950
      %952 = vmatprep.subr.mxu0 0.0
      %953 = vmatpush1.msra.mxu0 0.0
      %954 = vmatprep.subr.mxu0 0.0
      %955 = vmatpush1.msra.mxu0 0.0
      %956 = vmatprep.subr.mxu0 0.0
      %957 = vmatpush1.msra.mxu0 0.0
      %958 = vmatprep.subr.mxu0 0.0
      %959 = vmatpush1.msra.mxu0 0.0
      %960 = vmatprep.subr.mxu0 0.0
      %961 = vmatpush1.msra.mxu0 0.0
      %962 = vmatprep.subr.mxu0 0.0
      %963 = vmatpush1.msra.mxu0 0.0
      %964 = vmatprep.subr.mxu0 0.0
      %965 = vmatpush1.msra.mxu0 0.0
      %966 = vmatprep.subr.mxu0 0.0
      %967 = vmatpush1.msra.mxu0 0.0
      %968 = vmatprep.subr.mxu0 0.0
      %969 = vmatpush1.msra.mxu0 0.0
      %970 = vmatprep.subr.mxu0 0.0
      %971 = vmatpush1.msra.mxu0 0.0
      %972 = vmatprep.subr.mxu0 0.0
      %973 = vmatpush1.msra.mxu0 0.0
      %974 = vmatprep.subr.mxu0 0.0
      %975 = vmatpush1.msra.mxu0 0.0
      %976 = vmatprep.subr.mxu0 0.0
      %977 = vmatpush1.msra.mxu0 0.0
      %978 = vmatprep.subr.mxu0 0.0
      %979 = vmatpush1.msra.mxu0 0.0
      %980 = vmatprep.subr.mxu0 0.0
      %981 = vmatpush1.msra.mxu0 0.0
      %982 = vmatprep.subr.mxu0 0.0
      %983 = vmatpush1.msra.mxu0 0.0
      %984 = vmatprep.subr.mxu0 0.0
      %985 = vmatpush1.msra.mxu0 0.0
      %986 = vmatprep.subr.mxu0 0.0
      %987 = vmatpush1.msra.mxu0 0.0
      %988 = vmatprep.subr.mxu0 0.0
      %989 = vmatpush1.msra.mxu0 0.0
      %990 = vmatprep.subr.mxu0 0.0
      %991 = vmatpush1.msra.mxu0 0.0
      %992 = vmatprep.subr.mxu0 0.0
      %993 = vmatpush1.msra.mxu0 0.0
      %994 = vmatprep.subr.mxu0 0.0
      %995 = vmatpush1.msra.mxu0 0.0
      %996 = vmatprep.subr.mxu0 0.0
      %997 = vmatpush1.msra.mxu0 0.0
      %998 = vmatprep.subr.mxu0 0.0
      %999 = vmatpush1.msra.mxu0 0.0
      %1000 = vmatprep.subr.mxu0 0.0
      %1001 = vmatpush1.msra.mxu0 0.0
      %1002 = vmatprep.subr.mxu0 0.0
      %1003 = vmatpush1.msra.mxu0 0.0
      %1004 = vmatprep.subr.mxu0 0.0
      %1005 = vmatpush1.msra.mxu0 0.0
      %1006 = vmatprep.subr.mxu0 0.0
      %1007 = vmatpush1.msra.mxu0 0.0
      %1008 = vmatprep.subr.mxu0 0.0
      %1009 = vmatpush1.msra.mxu0 0.0
      %1010 = vmatprep.subr.mxu0 0.0
      %1011 = vmatpush1.msra.mxu0 0.0
      %1012 = vmatprep.subr.mxu0 0.0
      %1013 = vmatpush1.msra.mxu0 0.0
      %1014 = vmatprep.mubr.f32.mxu0 0.0
      %v1015 = vand.u32 %v776, 4294901760
      %v1016 = vsub.f32 %v776, %v1015
      %1017 = vmatmul.mubr.f32.gmra.mrb[0].mxu0 %v1016
      %v1018 = vpop.f32.mrb[0].mxu0
      %v1019 = vadd.f32 %v939, %v1018
      %v1020 = vpop.f32.mrb[0].mxu0
      %1021 = vmatprep.mubr.f32.mxu0 0.0
      %v1022 = vand.u32 %v778, 4294901760
      %v1023 = vsub.f32 %v778, %v1022
      %1024 = vmatmul.mubr.f32.gmra.mrb[0].mxu0 %v1023
      %v1025 = vpop.f32.mrb[0].mxu0
      %v1026 = vadd.f32 %v945, %v1025
      %v1027 = vpop.f32.mrb[0].mxu0
      %1028 = vdwg.mxu0
      %1029 = vmatprep.subr.mxu0 0.0
      %v1030 = vand.u32 %v279, 4294901760
      %1031 = vmatpush1.msra.mxu0 %v1030
      %1032 = vmatprep.subr.mxu0 0.0
      %1033 = vmatpush1.msra.mxu0 0.0
      %1034 = vmatprep.subr.mxu0 0.0
      %1035 = vmatpush1.msra.mxu0 0.0
      %1036 = vmatprep.subr.mxu0 0.0
      %1037 = vmatpush1.msra.mxu0 0.0
      %1038 = vmatprep.subr.mxu0 0.0
      %1039 = vmatpush1.msra.mxu0 0.0
      %1040 = vmatprep.subr.mxu0 0.0
      %1041 = vmatpush1.msra.mxu0 0.0
      %1042 = vmatprep.subr.mxu0 0.0
      %1043 = vmatpush1.msra.mxu0 0.0
      %1044 = vmatprep.subr.mxu0 0.0
      %1045 = vmatpush1.msra.mxu0 0.0
      %1046 = vmatprep.subr.mxu0 0.0
      %1047 = vmatpush1.msra.mxu0 0.0
      %1048 = vmatprep.subr.mxu0 0.0
      %1049 = vmatpush1.msra.mxu0 0.0
      %1050 = vmatprep.subr.mxu0 0.0
      %1051 = vmatpush1.msra.mxu0 0.0
      %1052 = vmatprep.subr.mxu0 0.0
      %1053 = vmatpush1.msra.mxu0 0.0
      %1054 = vmatprep.subr.mxu0 0.0
      %1055 = vmatpush1.msra.mxu0 0.0
      %1056 = vmatprep.subr.mxu0 0.0
      %1057 = vmatpush1.msra.mxu0 0.0
      %1058 = vmatprep.subr.mxu0 0.0
      %1059 = vmatpush1.msra.mxu0 0.0
      %1060 = vmatprep.subr.mxu0 0.0
      %1061 = vmatpush1.msra.mxu0 0.0
      %1062 = vmatprep.subr.mxu0 0.0
      %1063 = vmatpush1.msra.mxu0 0.0
      %1064 = vmatprep.subr.mxu0 0.0
      %1065 = vmatpush1.msra.mxu0 0.0
      %1066 = vmatprep.subr.mxu0 0.0
      %1067 = vmatpush1.msra.mxu0 0.0
      %1068 = vmatprep.subr.mxu0 0.0
      %1069 = vmatpush1.msra.mxu0 0.0
      %1070 = vmatprep.subr.mxu0 0.0
      %1071 = vmatpush1.msra.mxu0 0.0
      %1072 = vmatprep.subr.mxu0 0.0
      %1073 = vmatpush1.msra.mxu0 0.0
      %1074 = vmatprep.subr.mxu0 0.0
      %1075 = vmatpush1.msra.mxu0 0.0
      %1076 = vmatprep.subr.mxu0 0.0
      %1077 = vmatpush1.msra.mxu0 0.0
      %1078 = vmatprep.subr.mxu0 0.0
      %1079 = vmatpush1.msra.mxu0 0.0
      %1080 = vmatprep.subr.mxu0 0.0
      %1081 = vmatpush1.msra.mxu0 0.0
      %1082 = vmatprep.subr.mxu0 0.0
      %1083 = vmatpush1.msra.mxu0 0.0
      %1084 = vmatprep.subr.mxu0 0.0
      %1085 = vmatpush1.msra.mxu0 0.0
      %1086 = vmatprep.subr.mxu0 0.0
      %1087 = vmatpush1.msra.mxu0 0.0
      %1088 = vmatprep.subr.mxu0 0.0
      %1089 = vmatpush1.msra.mxu0 0.0
      %1090 = vmatprep.subr.mxu0 0.0
      %1091 = vmatpush1.msra.mxu0 0.0
      %1092 = vmatprep.subr.mxu0 0.0
      %1093 = vmatpush1.msra.mxu0 0.0
      %1094 = vmatprep.mubr.f32.mxu0 0.0
      %v1095 = vand.u32 %v776, 4294901760
      %v1096 = vsub.f32 %v776, %v1095
      %v1097 = vand.u32 %v1096, 4294901760
      %1098 = vmatmul.mubr.f32.gmra.mrb[0].mxu0 %v1097
      %v1099 = vpop.f32.mrb[0].mxu0
      %v1100 = vadd.f32 %v1019, %v1099
      %v1101 = vpop.f32.mrb[0].mxu0
      %1102 = vmatprep.mubr.f32.mxu0 0.0
      %v1103 = vand.u32 %v778, 4294901760
      %v1104 = vsub.f32 %v778, %v1103
      %v1105 = vand.u32 %v1104, 4294901760
      %1106 = vmatmul.mubr.f32.gmra.mrb[0].mxu0 %v1105
      %v1107 = vpop.f32.mrb[0].mxu0
      %v1108 = vadd.f32 %v1026, %v1107
      %v1109 = vpop.f32.mrb[0].mxu0
      %1110 = vdwg.mxu0
      %1111 = vmatprep.subr.mxu0 0.0
      %v1112 = vand.u32 %v279, 4294901760
      %v1113 = vsub.f32 %v279, %v1112
      %v1114 = vand.u32 %v1113, 4294901760
      %1115 = vmatpush1.msra.mxu0 %v1114
      %1116 = vmatprep.subr.mxu0 0.0
      %1117 = vmatpush1.msra.mxu0 0.0
      %1118 = vmatprep.subr.mxu0 0.0
      %1119 = vmatpush1.msra.mxu0 0.0
      %1120 = vmatprep.subr.mxu0 0.0
      %1121 = vmatpush1.msra.mxu0 0.0
      %1122 = vmatprep.subr.mxu0 0.0
      %1123 = vmatpush1.msra.mxu0 0.0
      %1124 = vmatprep.subr.mxu0 0.0
      %1125 = vmatpush1.msra.mxu0 0.0
      %1126 = vmatprep.subr.mxu0 0.0
      %1127 = vmatpush1.msra.mxu0 0.0
      %1128 = vmatprep.subr.mxu0 0.0
      %1129 = vmatpush1.msra.mxu0 0.0
      %1130 = vmatprep.subr.mxu0 0.0
      %1131 = vmatpush1.msra.mxu0 0.0
      %1132 = vmatprep.subr.mxu0 0.0
      %1133 = vmatpush1.msra.mxu0 0.0
      %1134 = vmatprep.subr.mxu0 0.0
      %1135 = vmatpush1.msra.mxu0 0.0
      %1136 = vmatprep.subr.mxu0 0.0
      %1137 = vmatpush1.msra.mxu0 0.0
      %1138 = vmatprep.subr.mxu0 0.0
      %1139 = vmatpush1.msra.mxu0 0.0
      %1140 = vmatprep.subr.mxu0 0.0
      %1141 = vmatpush1.msra.mxu0 0.0
      %1142 = vmatprep.subr.mxu0 0.0
      %1143 = vmatpush1.msra.mxu0 0.0
      %1144 = vmatprep.subr.mxu0 0.0
      %1145 = vmatpush1.msra.mxu0 0.0
      %1146 = vmatprep.subr.mxu0 0.0
      %1147 = vmatpush1.msra.mxu0 0.0
      %1148 = vmatprep.subr.mxu0 0.0
      %1149 = vmatpush1.msra.mxu0 0.0
      %1150 = vmatprep.subr.mxu0 0.0
      %1151 = vmatpush1.msra.mxu0 0.0
      %1152 = vmatprep.subr.mxu0 0.0
      %1153 = vmatpush1.msra.mxu0 0.0
      %1154 = vmatprep.subr.mxu0 0.0
      %1155 = vmatpush1.msra.mxu0 0.0
      %1156 = vmatprep.subr.mxu0 0.0
      %1157 = vmatpush1.msra.mxu0 0.0
      %1158 = vmatprep.subr.mxu0 0.0
      %1159 = vmatpush1.msra.mxu0 0.0
      %1160 = vmatprep.subr.mxu0 0.0
      %1161 = vmatpush1.msra.mxu0 0.0
      %1162 = vmatprep.subr.mxu0 0.0
      %1163 = vmatpush1.msra.mxu0 0.0
      %1164 = vmatprep.subr.mxu0 0.0
      %1165 = vmatpush1.msra.mxu0 0.0
      %1166 = vmatprep.subr.mxu0 0.0
      %1167 = vmatpush1.msra.mxu0 0.0
      %1168 = vmatprep.subr.mxu0 0.0
      %1169 = vmatpush1.msra.mxu0 0.0
      %1170 = vmatprep.subr.mxu0 0.0
      %1171 = vmatpush1.msra.mxu0 0.0
      %1172 = vmatprep.subr.mxu0 0.0
      %1173 = vmatpush1.msra.mxu0 0.0
      %1174 = vmatprep.subr.mxu0 0.0
      %1175 = vmatpush1.msra.mxu0 0.0
      %1176 = vmatprep.subr.mxu0 0.0
      %1177 = vmatpush1.msra.mxu0 0.0
      %1178 = vmatprep.mubr.f32.mxu0 0.0
      %v1179 = vand.u32 %v776, 4294901760
      %1180 = vmatmul.mubr.f32.gmra.mrb[0].mxu0 %v1179
      %v1181 = vpop.f32.mrb[0].mxu0
      %v1182 = vadd.f32 %v1100, %v1181
      %v1183 = vpop.f32.mrb[0].mxu0
      %1184 = vmatprep.mubr.f32.mxu0 0.0
      %v1185 = vand.u32 %v778, 4294901760
      %1186 = vmatmul.mubr.f32.gmra.mrb[0].mxu0 %v1185
      %v1187 = vpop.f32.mrb[0].mxu0
      %v1188 = vadd.f32 %v1108, %v1187
      %v1189 = vpop.f32.mrb[0].mxu0
      %1190 = vdwg.mxu0
      %1191 = vmatprep.subr.mxu0 0.0
      %v1192 = vand.u32 %v279, 4294901760
      %1193 = vmatpush1.msra.mxu0 %v1192
      %1194 = vmatprep.subr.mxu0 0.0
      %1195 = vmatpush1.msra.mxu0 0.0
      %1196 = vmatprep.subr.mxu0 0.0
      %1197 = vmatpush1.msra.mxu0 0.0
      %1198 = vmatprep.subr.mxu0 0.0
      %1199 = vmatpush1.msra.mxu0 0.0
      %1200 = vmatprep.subr.mxu0 0.0
      %1201 = vmatpush1.msra.mxu0 0.0
      %1202 = vmatprep.subr.mxu0 0.0
      %1203 = vmatpush1.msra.mxu0 0.0
      %1204 = vmatprep.subr.mxu0 0.0
      %1205 = vmatpush1.msra.mxu0 0.0
      %1206 = vmatprep.subr.mxu0 0.0
      %1207 = vmatpush1.msra.mxu0 0.0
      %1208 = vmatprep.subr.mxu0 0.0
      %1209 = vmatpush1.msra.mxu0 0.0
      %1210 = vmatprep.subr.mxu0 0.0
      %1211 = vmatpush1.msra.mxu0 0.0
      %1212 = vmatprep.subr.mxu0 0.0
      %1213 = vmatpush1.msra.mxu0 0.0
      %1214 = vmatprep.subr.mxu0 0.0
      %1215 = vmatpush1.msra.mxu0 0.0
      %1216 = vmatprep.subr.mxu0 0.0
      %1217 = vmatpush1.msra.mxu0 0.0
      %1218 = vmatprep.subr.mxu0 0.0
      %1219 = vmatpush1.msra.mxu0 0.0
      %1220 = vmatprep.subr.mxu0 0.0
      %1221 = vmatpush1.msra.mxu0 0.0
      %1222 = vmatprep.subr.mxu0 0.0
      %1223 = vmatpush1.msra.mxu0 0.0
      %1224 = vmatprep.subr.mxu0 0.0
      %1225 = vmatpush1.msra.mxu0 0.0
      %1226 = vmatprep.subr.mxu0 0.0
      %1227 = vmatpush1.msra.mxu0 0.0
      %1228 = vmatprep.subr.mxu0 0.0
      %1229 = vmatpush1.msra.mxu0 0.0
      %1230 = vmatprep.subr.mxu0 0.0
      %1231 = vmatpush1.msra.mxu0 0.0
      %1232 = vmatprep.subr.mxu0 0.0
      %1233 = vmatpush1.msra.mxu0 0.0
      %1234 = vmatprep.subr.mxu0 0.0
      %1235 = vmatpush1.msra.mxu0 0.0
      %1236 = vmatprep.subr.mxu0 0.0
      %1237 = vmatpush1.msra.mxu0 0.0
      %1238 = vmatprep.subr.mxu0 0.0
      %1239 = vmatpush1.msra.mxu0 0.0
      %1240 = vmatprep.subr.mxu0 0.0
      %1241 = vmatpush1.msra.mxu0 0.0
      %1242 = vmatprep.subr.mxu0 0.0
      %1243 = vmatpush1.msra.mxu0 0.0
      %1244 = vmatprep.subr.mxu0 0.0
      %1245 = vmatpush1.msra.mxu0 0.0
      %1246 = vmatprep.subr.mxu0 0.0
      %1247 = vmatpush1.msra.mxu0 0.0
      %1248 = vmatprep.subr.mxu0 0.0
      %1249 = vmatpush1.msra.mxu0 0.0
      %1250 = vmatprep.subr.mxu0 0.0
      %1251 = vmatpush1.msra.mxu0 0.0
      %1252 = vmatprep.subr.mxu0 0.0
      %1253 = vmatpush1.msra.mxu0 0.0
      %1254 = vmatprep.subr.mxu0 0.0
      %1255 = vmatpush1.msra.mxu0 0.0
      %1256 = vmatprep.mubr.f32.mxu0 0.0
      %v1257 = vand.u32 %v776, 4294901760
      %1258 = vmatmul.mubr.f32.gmra.mrb[0].mxu0 %v1257
      %v1259 = vpop.f32.mrb[0].mxu0
      %v1260 = vadd.f32 %v1182, %v1259
      %v1261 = vpop.f32.mrb[0].mxu0
      %1262 = vmatprep.mubr.f32.mxu0 0.0
      %v1263 = vand.u32 %v778, 4294901760
      %1264 = vmatmul.mubr.f32.gmra.mrb[0].mxu0 %v1263
      %v1265 = vpop.f32.mrb[0].mxu0
      %v1266 = vadd.f32 %v1188, %v1265
      %v1267 = vpop.f32.mrb[0].mxu0
      %1268 = vdwg.mxu0
      %vm1269 = vcmask 31744
      %1270 = vst.msk [vmem:[%s260] sm:$0xff] %vm1269, %v1260
      %1271 = vst.msk [vmem:[%s260 + $0x8] sm:$0xff] %vm1269, %v1266
      %s1272 = smul.u32 2, %s20
      %p1273 = scmp.lt.s32.totalorder %s19, 1
      %s1274 = scalar_select %p1273, %s19, 1
      %p1275 = scmp.lt.s32.totalorder %s1272, 1
      %s1276 = scalar_select %p1275, %s1272, 1
      %s1277 = smul.addr %s1274, 2
      %s1278 = sadd.s32 %s1276, %s1277
      %s1279 = smul.addr %s1278, 8
      %s1280 = scalar_lea.vmem %s4, %s1279
      // Predicated region
      $region37: #{downsample_forward.1} parent=35 // pred_check
        %p1281 = pneg %p145
      $region38: #{downsample_forward.1} parent=35 // pred_check_branch
        %1283 = sbr.rel (%p1281) target = $region40
      $region39: #{downsample_forward.1} parent=35 // pred_region
        %s1284 = smul.u32 2, %s20
      $region40: #{downsample_forward.1} parent=35 // pred_fallthru
        _
    $region36: #{downsample_forward.1} parent=5 // pred_fallthru
      _
    %p1285 = scmp.le.s32.totalorder 2, %s10
    // Predicated region
    $region41: #{downsample_forward.1} parent=5 // pred_check
      %p1286 = pneg %p1285
    $region42: #{downsample_forward.1} parent=5 // pred_check_branch
      %1288 = sbr.rel (%p1286) target = $region44
    $region43: #{downsample_forward.1} parent=5 // pred_region
      %s1289 = ssub.s32 %s10, 2
      // Predicated region
      $region45: #{downsample_forward.1} parent=43 // pred_check
        %p1290 = pneg %p151
      $region46: #{downsample_forward.1} parent=43 // pred_check_branch
        %1292 = sbr.rel (%p1290) target = $region48
      $region47: #{downsample_forward.1} parent=43 // pred_region
        %s1293 = smul.u32 2, %s22
        %p1294 = scmp.lt.s32.totalorder %s21, 1
        %s1295 = scalar_select %p1294, %s21, 1
        %p1296 = scmp.lt.s32.totalorder %s1293, 1
        %s1297 = scalar_select %p1296, %s1293, 1
        %s1298 = smul.addr %s1295, 2
        %s1299 = sadd.s32 %s1297, %s1298
        %s1300 = smul.addr %s1299, 8
        %s1301 = scalar_lea.vmem %s4, %s1300
      $region48: #{downsample_forward.1} parent=43 // pred_fallthru
        _
    $region44: #{downsample_forward.1} parent=5 // pred_fallthru
      _
  $region6: #{downsample_forward.1} parent=0 // loop_footer
    %s14 = sadd.s32 1, %s10
  $region7: #{downsample_forward.1} parent=0 // loop_footer_branch
    %9 = sbr.rel target = $region3
  $region8: #{downsample_forward.1} parent=0 // loop_exit
    _

</llo_original>
